<compile_context>
chip_gen: v5e
topology: v5e:2x2
jax: 0.10.0
libtpu: 0.0.40
codegen_flags: <defaults>
</compile_context>

<pallas_src>
import jax
import jax.numpy as jnp
from jax import lax
from jax.experimental import pallas as pl
from jax.experimental.pallas import tpu as pltpu

_SELU_ALPHA = 1.6732632423543772848170429916717
_SELU_SCALE = 1.0507009873554804934193349852946
_LANE = 128          # lane-dense width of the packed output slab
_NEG_INF = -1e30     # bias for masked softmax lanes


def _selu(y):
    return _SELU_SCALE * jnp.where(y > 0, y, _SELU_ALPHA * (jnp.exp(y) - 1.0))


# ------------------------------ fused kernel ---------------------------------

def _make_fused_kernel(nd, n_ent, n_layers):
    """Fused SS_network forward (f_ll / MLP) for one batch tile.

    Ref order: ids (3, bm, nd) int32 domain-offset ids,
               emb_bd (nd*E, nd*emb) bf16 block-diagonal table,
               w[0..L-1] bf16 merged weights, b[0..L-1] f32 merged biases,
               out (bm, 128) f32   (lane 0 = sigmoid agreement, lanes 1..C = softmax)
    """
    wide = nd * n_ent

    def kernel(ids_ref, ebd_ref, *refs):
        w_refs = refs[:n_layers]
        b_refs = refs[n_layers:2 * n_layers]
        o_ref = refs[2 * n_layers]

        bm = ids_ref.shape[1]
        ids = ids_ref[...]                                            # [3, bm, nd] int32
        ids2 = jnp.concatenate([ids[0], ids[1], ids[2]], axis=0)       # [3bm, nd]

        # One wide one-hot per stacked row (offset ids occupy disjoint per-domain
        # lane ranges), then ONE matmul against the block-diagonal embedding table
        # yields all three concatenated record embeddings.
        iota = lax.broadcasted_iota(jnp.int32, (3 * bm, wide), 1)
        oh = iota == ids2[:, 0:1]
        for d in range(1, nd):
            oh = oh | (iota == ids2[:, d:d + 1])
        oh = oh.astype(jnp.float32).astype(jnp.bfloat16)               # exact 0/1 in bf16
        e_all = jnp.dot(oh, ebd_ref[...], preferred_element_type=jnp.float32)  # [3bm, rec]
        e1 = e_all[:bm]
        e2 = e_all[bm:2 * bm]
        ef = e_all[2 * bm:]

        # Merged trunks: gam rows on top, clf rows below.  Layer-0 weights are
        # column-concatenated (shared record-dim input); later layers are
        # block-diagonal so the two nets never mix even though each layer is a
        # single matmul.
        h = jnp.concatenate([jnp.abs(e1 - e2), ef], axis=0)            # [2bm, rec] f32
        for li in range(n_layers - 1):
            y = jnp.dot(h.astype(jnp.bfloat16), w_refs[li][...],
                        preferred_element_type=jnp.float32) + b_refs[li][...]
            h = _selu(y)

        # Merged head into one lane-dense 128-wide slab.
        y = jnp.dot(h.astype(jnp.bfloat16), w_refs[n_layers - 1][...],
                    preferred_element_type=jnp.float32) + b_refs[n_layers - 1][...]
        y_g = jnp.maximum(y[:bm], -60.0)       # pad lanes carry -1e30 bias; keep exp finite
        y_c = y[bm:]
        lane = lax.broadcasted_iota(jnp.int32, (bm, _LANE), 1)
        y_c = jnp.where(lane == 0, _NEG_INF, y_c)   # gam lane must not join the softmax

        sig = pl.reciprocal(1.0 + jnp.exp(-y_g), approx=True)
        m = jnp.max(y_c, axis=-1, keepdims=True)
        ex = jnp.exp(y_c - m)
        soft = ex * pl.reciprocal(jnp.sum(ex, axis=-1, keepdims=True), approx=True)
        o_ref[...] = jnp.where(lane == 0, sig, soft)

    return kernel


# -------------------------------- wrapper -------------------------------------

def _pick_bm(batch, block_b):
    if batch % 8 != 0:
        return batch                       # single full-extent tile (always legal)
    bm = min(block_b, batch)
    bm = max(8, bm - bm % 8)
    while batch % bm:
        bm -= 8
    # v7x has 2 TensorCores: give the "parallel" grid >= 2 steps when batch allows.
    if bm == batch and batch >= 16 and (batch // 2) % 8 == 0:
        bm = batch // 2
    return bm


def ss_network_forward_f_ll(input_x, emb_table, agreement_params, clf_params, *,
                            block_b=1024):
    """SS_network.forward with train_mode == 'f_ll', clf_type == 'MLP' (dropout = eval)."""
    x1_G, x2_G, x1_F = (x.astype(jnp.int32) for x in input_x)
    B, nd = x1_G.shape
    n_ent, emb_dim = emb_table.shape
    record_dim = nd * emb_dim

    gam_ws = [w.astype(jnp.float32) for w in agreement_params["w"]]
    gam_bs = [b.astype(jnp.float32).reshape(1, -1) for b in agreement_params["b"]]
    clf_ws = [w.astype(jnp.float32) for w in clf_params["w"]]
    clf_bs = [b.astype(jnp.float32).reshape(1, -1) for b in clf_params["b"]]
    if len(gam_ws) != len(clf_ws):
        # TODO(synk): unequal agreement/classifier depths would need separate trunks.
        raise ValueError("merged-trunk kernel expects equal gam/clf layer counts")
    n_layers = len(gam_ws)
    assert n_layers >= 2, "expect at least one hidden + one output layer"
    n_classes = clf_ws[-1].shape[1]
    assert gam_ws[-1].shape[1] == 1 and 1 + n_classes <= _LANE

    # Block-diagonal embedding table: one wide one-hot matmul -> concatenated record embs.
    ebd = jnp.zeros((nd * n_ent, record_dim), jnp.float32)
    for d in range(nd):
        ebd = ebd.at[d * n_ent:(d + 1) * n_ent,
                     d * emb_dim:(d + 1) * emb_dim].set(emb_table.astype(jnp.float32))
    ebd = ebd.astype(jnp.bfloat16)

    # Merged weights: layer 0 column-concat, hidden layers block-diag, head packed into a
    # single 128-lane slab (lane 0 = agreement logit, lanes 1..C = class logits, rest -inf).
    def block_diag(a, b):
        out = jnp.zeros((a.shape[0] + b.shape[0], a.shape[1] + b.shape[1]), jnp.float32)
        out = out.at[:a.shape[0], :a.shape[1]].set(a)
        out = out.at[a.shape[0]:, a.shape[1]:].set(b)
        return out

    merged_ws = [jnp.concatenate([gam_ws[0], clf_ws[0]], axis=1)]
    merged_bs = [jnp.concatenate([gam_bs[0], clf_bs[0]], axis=1)]
    for li in range(1, n_layers - 1):
        merged_ws.append(block_diag(gam_ws[li], clf_ws[li]))
        merged_bs.append(jnp.concatenate([gam_bs[li], clf_bs[li]], axis=1))
    d_g, d_c = gam_ws[-1].shape[0], clf_ws[-1].shape[0]
    wh = jnp.zeros((d_g + d_c, _LANE), jnp.float32)
    wh = wh.at[:d_g, 0:1].set(gam_ws[-1])
    wh = wh.at[d_g:, 1:1 + n_classes].set(clf_ws[-1])
    bh = jnp.full((1, _LANE), _NEG_INF, jnp.float32)
    bh = bh.at[:, 0:1].set(gam_bs[-1])
    bh = bh.at[:, 1:1 + n_classes].set(clf_bs[-1])
    merged_ws.append(wh)
    merged_bs.append(bh)
    merged_ws = [w.astype(jnp.bfloat16) for w in merged_ws]

    # Domain-offset ids, packed into a single int32 input (one DMA per tile).
    dom_off = (jnp.arange(nd, dtype=jnp.int32) * n_ent)[None, :]
    ids = jnp.stack([x1_G + dom_off, x2_G + dom_off, x1_F + dom_off], axis=0)  # [3, B, nd]

    bm = _pick_bm(B, block_b)
    grid = (B // bm,)

    def const2d(shape):
        return pl.BlockSpec(shape, lambda i: (0, 0))

    in_specs = ([pl.BlockSpec((3, bm, nd), lambda i: (0, i, 0)),
                 const2d(ebd.shape)]
                + [const2d(w.shape) for w in merged_ws]
                + [const2d(b.shape) for b in merged_bs])
    out_specs = pl.BlockSpec((bm, _LANE), lambda i: (i, 0))

    kernel = _make_fused_kernel(nd, n_ent, n_layers)
    out = pl.pallas_call(
        kernel,
        grid=grid,
        in_specs=in_specs,
        out_specs=out_specs,
        out_shape=jax.ShapeDtypeStruct((B, _LANE), jnp.float32),
        compiler_params=pltpu.CompilerParams(dimension_semantics=("parallel",)),
    )(ids, ebd, *merged_ws, *merged_bs)

    return out[:, 0:1], out[:, 1:1 + n_classes]


# ----------------------------- pure-JAX reference -----------------------------

def _reference_forward(input_x, emb_table, agreement_params, clf_params):
    def graph(idx):
        e = jnp.take(emb_table, idx, axis=0)
        return e.reshape(idx.shape[0], -1).astype(jnp.float32)

    def mlp_logits(x, params):
        h = x
        for w, b in zip(params["w"][:-1], params["b"][:-1]):
            h = _selu(h @ w + b)
        return h @ params["w"][-1] + params["b"][-1]

    x1_G, x2_G, x1_F = input_x
    x1, x2, xf = graph(x1_G), graph(x2_G), graph(x1_F)
    pred_agreement = jax.nn.sigmoid(mlp_logits(jnp.abs(x1 - x2), agreement_params))
    pred_y1 = jax.nn.softmax(mlp_logits(xf, clf_params), axis=-1)
    return pred_agreement, pred_y1


# -------------------------------- param init ----------------------------------

def _init_mlp(key, dims):
    ws, bs = [], []
    for din, dout in zip(dims[:-1], dims[1:]):
        kw, key = jax.random.split(key)
        ws.append(jax.random.normal(kw, (din, dout), jnp.float32) * 0.1)
        bs.append(jnp.zeros((1, dout), jnp.float32))
    return {"w": ws, "b": bs}


if __name__ == "__main__":
    key = jax.random.PRNGKey(0)

    B = 8
    num_domains = 4
    node_emb_dimension = 16
    num_entities = 64
    record_dim = node_emb_dimension * num_domains            # gam_record_input_dimension
    list_gam_encoder_dimensions = [32, 16]                    # gam_net hidden dims
    mlp_layer_dims = [32, 16, 2]                              # clf_MLP dims (last = #classes)

    k_emb, k_gam, k_clf, k1, k2, k3 = jax.random.split(key, 6)

    emb_table = jax.random.normal(k_emb, (num_entities, node_emb_dimension), jnp.float32)
    agreement_params = _init_mlp(k_gam, [record_dim] + list_gam_encoder_dimensions + [1])
    clf_params = _init_mlp(k_clf, [record_dim] + mlp_layer_dims)

    x1_G = jax.random.randint(k1, (B, num_domains), 0, num_entities, dtype=jnp.int32)
    x2_G = jax.random.randint(k2, (B, num_domains), 0, num_entities, dtype=jnp.int32)
    x1_F = jax.random.randint(k3, (B, num_domains), 0, num_entities, dtype=jnp.int32)

    fwd = jax.jit(ss_network_forward_f_ll)
    pred_agreement, pred_y1 = fwd((x1_G, x2_G, x1_F), emb_table, agreement_params, clf_params)
    jax.block_until_ready((pred_agreement, pred_y1))

    ref_agreement, ref_y1 = _reference_forward((x1_G, x2_G, x1_F), emb_table,
                                               agreement_params, clf_params)

    assert pred_agreement.shape == (B, 1)
    assert pred_y1.shape == (B, mlp_layer_dims[-1])
    assert jnp.allclose(pred_agreement, ref_agreement, atol=2e-2, rtol=2e-2)
    assert jnp.allclose(pred_y1, ref_y1, atol=2e-2, rtol=2e-2)
    print("KERNEL_OK")
</pallas_src>

<mosaic_0001>
module attributes {stable_mosaic.version = 11 : i64} {
  func.func @kernel(%arg0: i32, %arg1: memref<3x8x4xi32, #tpu.memory_space<vmem>>, %arg2: memref<256x64xbf16, #tpu.memory_space<vmem>>, %arg3: memref<64x64xbf16, #tpu.memory_space<vmem>>, %arg4: memref<64x32xbf16, #tpu.memory_space<vmem>>, %arg5: memref<32x128xbf16, #tpu.memory_space<vmem>>, %arg6: memref<1x64xf32, #tpu.memory_space<vmem>>, %arg7: memref<1x32xf32, #tpu.memory_space<vmem>>, %arg8: memref<1x128xf32, #tpu.memory_space<vmem>>, %arg9: memref<8x128xf32, #tpu.memory_space<vmem>>) attributes {dimension_semantics = [#tpu.dimension_semantics<parallel>], iteration_bounds = array<i64: 1>, scalar_prefetch = 0 : i64, scratch_operands = 0 : i64, tpu.core_type = #tpu.core_type<tc>, window_params = [{transform_indices = @transform_0, window_bounds = array<i64: 3, 8, 4>}, {pipeline_mode = #tpu.pipeline_mode<synchronous>, transform_indices = @transform_1, window_bounds = array<i64: 256, 64>}, {pipeline_mode = #tpu.pipeline_mode<synchronous>, transform_indices = @transform_2, window_bounds = array<i64: 64, 64>}, {pipeline_mode = #tpu.pipeline_mode<synchronous>, transform_indices = @transform_3, window_bounds = array<i64: 64, 32>}, {pipeline_mode = #tpu.pipeline_mode<synchronous>, transform_indices = @transform_4, window_bounds = array<i64: 32, 128>}, {pipeline_mode = #tpu.pipeline_mode<synchronous>, transform_indices = @transform_5, window_bounds = array<i64: 1, 64>}, {pipeline_mode = #tpu.pipeline_mode<synchronous>, transform_indices = @transform_6, window_bounds = array<i64: 1, 32>}, {pipeline_mode = #tpu.pipeline_mode<synchronous>, transform_indices = @transform_7, window_bounds = array<i64: 1, 128>}, {transform_indices = @transform_8, window_bounds = array<i64: 8, 128>}]} {
    %c0 = arith.constant 0 : index
    %c0_0 = arith.constant 0 : index
    %c0_1 = arith.constant 0 : index
    %0 = vector.load %arg1[%c0, %c0_0, %c0_1] : memref<3x8x4xi32, #tpu.memory_space<vmem>>, vector<3x8x4xi32>
    %1 = vector.extract_strided_slice %0 {offsets = [0, 0, 0], sizes = [1, 8, 4], strides = [1, 1, 1]} : vector<3x8x4xi32> to vector<1x8x4xi32>
    %2 = vector.shape_cast %1 : vector<1x8x4xi32> to vector<8x4xi32>
    %3 = vector.extract_strided_slice %0 {offsets = [1, 0, 0], sizes = [1, 8, 4], strides = [1, 1, 1]} : vector<3x8x4xi32> to vector<1x8x4xi32>
    %4 = vector.shape_cast %3 : vector<1x8x4xi32> to vector<8x4xi32>
    %5 = vector.extract_strided_slice %0 {offsets = [2, 0, 0], sizes = [1, 8, 4], strides = [1, 1, 1]} : vector<3x8x4xi32> to vector<1x8x4xi32>
    %6 = vector.shape_cast %5 : vector<1x8x4xi32> to vector<8x4xi32>
    %7 = tpu.concatenate %2, %4, %6 in 0 : vector<8x4xi32>, vector<8x4xi32>, vector<8x4xi32> -> vector<24x4xi32>
    %8 = tpu.iota {dimensions = array<i32: 1>} : vector<24x256xi32>
    %9 = vector.extract_strided_slice %7 {offsets = [0, 0], sizes = [24, 1], strides = [1, 1]} : vector<24x4xi32> to vector<24x1xi32>
    %10 = vector.broadcast %9 : vector<24x1xi32> to vector<24x256xi32>
    %11 = arith.cmpi eq, %8, %10 : vector<24x256xi32>
    %12 = vector.extract_strided_slice %7 {offsets = [0, 1], sizes = [24, 1], strides = [1, 1]} : vector<24x4xi32> to vector<24x1xi32>
    %13 = vector.broadcast %12 : vector<24x1xi32> to vector<24x256xi32>
    %14 = arith.cmpi eq, %8, %13 : vector<24x256xi32>
    %15 = arith.ori %11, %14 : vector<24x256xi1>
    %16 = vector.extract_strided_slice %7 {offsets = [0, 2], sizes = [24, 1], strides = [1, 1]} : vector<24x4xi32> to vector<24x1xi32>
    %17 = vector.broadcast %16 : vector<24x1xi32> to vector<24x256xi32>
    %18 = arith.cmpi eq, %8, %17 : vector<24x256xi32>
    %19 = arith.ori %15, %18 : vector<24x256xi1>
    %20 = vector.extract_strided_slice %7 {offsets = [0, 3], sizes = [24, 1], strides = [1, 1]} : vector<24x4xi32> to vector<24x1xi32>
    %21 = vector.broadcast %20 : vector<24x1xi32> to vector<24x256xi32>
    %22 = arith.cmpi eq, %8, %21 : vector<24x256xi32>
    %23 = arith.ori %19, %22 : vector<24x256xi1>
    %24 = arith.extui %23 : vector<24x256xi1> to vector<24x256xi32>
    %25 = arith.sitofp %24 : vector<24x256xi32> to vector<24x256xf32>
    %26 = arith.truncf %25 : vector<24x256xf32> to vector<24x256xbf16>
    %c0_2 = arith.constant 0 : index
    %c0_3 = arith.constant 0 : index
    %27 = vector.load %arg2[%c0_2, %c0_3] : memref<256x64xbf16, #tpu.memory_space<vmem>>, vector<256x64xbf16>
    %cst = arith.constant dense<0.000000e+00> : vector<24x64xf32>
    %28 = tpu.matmul %26, %27, %cst {dimension_numbers = #tpu.dot_dimension_numbers<[1], [0], [0], [1], [0, 0, 1, 1], [], []>} : vector<24x256xbf16>, vector<256x64xbf16>, vector<24x64xf32> -> vector<24x64xf32>
    %29 = vector.extract_strided_slice %28 {offsets = [0, 0], sizes = [8, 64], strides = [1, 1]} : vector<24x64xf32> to vector<8x64xf32>
    %30 = vector.extract_strided_slice %28 {offsets = [8, 0], sizes = [8, 64], strides = [1, 1]} : vector<24x64xf32> to vector<8x64xf32>
    %31 = vector.extract_strided_slice %28 {offsets = [16, 0], sizes = [8, 64], strides = [1, 1]} : vector<24x64xf32> to vector<8x64xf32>
    %32 = arith.subf %29, %30 : vector<8x64xf32>
    %33 = math.absf %32 : vector<8x64xf32>
    %34 = tpu.concatenate %33, %31 in 0 : vector<8x64xf32>, vector<8x64xf32> -> vector<16x64xf32>
    %35 = arith.truncf %34 : vector<16x64xf32> to vector<16x64xbf16>
    %c0_4 = arith.constant 0 : index
    %c0_5 = arith.constant 0 : index
    %36 = vector.load %arg3[%c0_4, %c0_5] : memref<64x64xbf16, #tpu.memory_space<vmem>>, vector<64x64xbf16>
    %cst_6 = arith.constant dense<0.000000e+00> : vector<16x64xf32>
    %37 = tpu.matmul %35, %36, %cst_6 {dimension_numbers = #tpu.dot_dimension_numbers<[1], [0], [0], [1], [0, 0, 1, 1], [], []>} : vector<16x64xbf16>, vector<64x64xbf16>, vector<16x64xf32> -> vector<16x64xf32>
    %c0_7 = arith.constant 0 : index
    %c0_8 = arith.constant 0 : index
    %38 = vector.load %arg6[%c0_7, %c0_8] : memref<1x64xf32, #tpu.memory_space<vmem>>, vector<1x64xf32>
    %39 = vector.broadcast %38 : vector<1x64xf32> to vector<16x64xf32>
    %40 = arith.addf %37, %39 : vector<16x64xf32>
    %cst_9 = arith.constant 0.000000e+00 : f32
    %41 = vector.broadcast %cst_9 : f32 to vector<16x64xf32>
    %42 = arith.cmpf ogt, %40, %41 : vector<16x64xf32>
    %43 = math.exp %40 : vector<16x64xf32>
    %cst_10 = arith.constant 1.000000e+00 : f32
    %44 = vector.broadcast %cst_10 : f32 to vector<16x64xf32>
    %45 = arith.subf %43, %44 : vector<16x64xf32>
    %cst_11 = arith.constant 1.67326319 : f32
    %46 = vector.broadcast %cst_11 : f32 to vector<16x64xf32>
    %47 = arith.mulf %46, %45 : vector<16x64xf32>
    %48 = arith.select %42, %40, %47 : vector<16x64xi1>, vector<16x64xf32>
    %cst_12 = arith.constant 1.05070102 : f32
    %49 = vector.broadcast %cst_12 : f32 to vector<16x64xf32>
    %50 = arith.mulf %49, %48 : vector<16x64xf32>
    %51 = arith.truncf %50 : vector<16x64xf32> to vector<16x64xbf16>
    %c0_13 = arith.constant 0 : index
    %c0_14 = arith.constant 0 : index
    %52 = vector.load %arg4[%c0_13, %c0_14] : memref<64x32xbf16, #tpu.memory_space<vmem>>, vector<64x32xbf16>
    %cst_15 = arith.constant dense<0.000000e+00> : vector<16x32xf32>
    %53 = tpu.matmul %51, %52, %cst_15 {dimension_numbers = #tpu.dot_dimension_numbers<[1], [0], [0], [1], [0, 0, 1, 1], [], []>} : vector<16x64xbf16>, vector<64x32xbf16>, vector<16x32xf32> -> vector<16x32xf32>
    %c0_16 = arith.constant 0 : index
    %c0_17 = arith.constant 0 : index
    %54 = vector.load %arg7[%c0_16, %c0_17] : memref<1x32xf32, #tpu.memory_space<vmem>>, vector<1x32xf32>
    %55 = vector.broadcast %54 : vector<1x32xf32> to vector<16x32xf32>
    %56 = arith.addf %53, %55 : vector<16x32xf32>
    %cst_18 = arith.constant 0.000000e+00 : f32
    %57 = vector.broadcast %cst_18 : f32 to vector<16x32xf32>
    %58 = arith.cmpf ogt, %56, %57 : vector<16x32xf32>
    %59 = math.exp %56 : vector<16x32xf32>
    %cst_19 = arith.constant 1.000000e+00 : f32
    %60 = vector.broadcast %cst_19 : f32 to vector<16x32xf32>
    %61 = arith.subf %59, %60 : vector<16x32xf32>
    %cst_20 = arith.constant 1.67326319 : f32
    %62 = vector.broadcast %cst_20 : f32 to vector<16x32xf32>
    %63 = arith.mulf %62, %61 : vector<16x32xf32>
    %64 = arith.select %58, %56, %63 : vector<16x32xi1>, vector<16x32xf32>
    %cst_21 = arith.constant 1.05070102 : f32
    %65 = vector.broadcast %cst_21 : f32 to vector<16x32xf32>
    %66 = arith.mulf %65, %64 : vector<16x32xf32>
    %67 = arith.truncf %66 : vector<16x32xf32> to vector<16x32xbf16>
    %c0_22 = arith.constant 0 : index
    %c0_23 = arith.constant 0 : index
    %68 = vector.load %arg5[%c0_22, %c0_23] : memref<32x128xbf16, #tpu.memory_space<vmem>>, vector<32x128xbf16>
    %cst_24 = arith.constant dense<0.000000e+00> : vector<16x128xf32>
    %69 = tpu.matmul %67, %68, %cst_24 {dimension_numbers = #tpu.dot_dimension_numbers<[1], [0], [0], [1], [0, 0, 1, 1], [], []>} : vector<16x32xbf16>, vector<32x128xbf16>, vector<16x128xf32> -> vector<16x128xf32>
    %c0_25 = arith.constant 0 : index
    %c0_26 = arith.constant 0 : index
    %70 = vector.load %arg8[%c0_25, %c0_26] : memref<1x128xf32, #tpu.memory_space<vmem>>, vector<1x128xf32>
    %71 = vector.broadcast %70 : vector<1x128xf32> to vector<16x128xf32>
    %72 = arith.addf %69, %71 : vector<16x128xf32>
    %73 = vector.extract_strided_slice %72 {offsets = [0, 0], sizes = [8, 128], strides = [1, 1]} : vector<16x128xf32> to vector<8x128xf32>
    %cst_27 = arith.constant -6.000000e+01 : f32
    %74 = vector.broadcast %cst_27 : f32 to vector<8x128xf32>
    %75 = arith.maximumf %73, %74 : vector<8x128xf32>
    %76 = vector.extract_strided_slice %72 {offsets = [8, 0], sizes = [8, 128], strides = [1, 1]} : vector<16x128xf32> to vector<8x128xf32>
    %77 = tpu.iota {dimensions = array<i32: 1>} : vector<8x128xi32>
    %c0_i32 = arith.constant 0 : i32
    %78 = vector.broadcast %c0_i32 : i32 to vector<8x128xi32>
    %79 = arith.cmpi eq, %77, %78 : vector<8x128xi32>
    %cst_28 = arith.constant -1.000000e+30 : f32
    %80 = vector.broadcast %cst_28 : f32 to vector<8x128xf32>
    %81 = arith.select %79, %80, %76 : vector<8x128xi1>, vector<8x128xf32>
    %cst_29 = arith.constant 0.000000e+00 : f32
    %82 = vector.broadcast %cst_29 : f32 to vector<8x128xf32>
    %83 = arith.subf %82, %75 : vector<8x128xf32>
    %84 = math.exp %83 : vector<8x128xf32>
    %cst_30 = arith.constant 1.000000e+00 : f32
    %85 = vector.broadcast %cst_30 : f32 to vector<8x128xf32>
    %86 = arith.addf %85, %84 : vector<8x128xf32>
    %87 = tpu.reciprocal %86 {approx = true} : vector<8x128xf32> -> vector<8x128xf32>
    %cst_31 = arith.constant dense<0xFF800000> : vector<8xf32>
    %88 = vector.multi_reduction <maximumf>, %81, %cst_31 [1] : vector<8x128xf32> to vector<8xf32>
    %89 = vector.shape_cast %88 : vector<8xf32> to vector<8x1xf32>
    %90 = vector.broadcast %89 : vector<8x1xf32> to vector<8x128xf32>
    %91 = arith.subf %81, %90 : vector<8x128xf32>
    %92 = math.exp %91 : vector<8x128xf32>
    %cst_32 = arith.constant dense<0.000000e+00> : vector<8xf32>
    %93 = vector.multi_reduction <add>, %92, %cst_32 [1] : vector<8x128xf32> to vector<8xf32>
    %94 = vector.shape_cast %93 : vector<8xf32> to vector<8x1xf32>
    %95 = tpu.reciprocal %94 {approx = true} : vector<8x1xf32> -> vector<8x1xf32>
    %96 = vector.broadcast %95 : vector<8x1xf32> to vector<8x128xf32>
    %97 = arith.mulf %92, %96 : vector<8x128xf32>
    %c0_i32_33 = arith.constant 0 : i32
    %98 = vector.broadcast %c0_i32_33 : i32 to vector<8x128xi32>
    %99 = arith.cmpi eq, %77, %98 : vector<8x128xi32>
    %100 = arith.select %99, %87, %97 : vector<8x128xi1>, vector<8x128xf32>
    %c0_34 = arith.constant 0 : index
    %c0_35 = arith.constant 0 : index
    %101 = vector.load %arg9[%c0_34, %c0_35] : memref<8x128xf32, #tpu.memory_space<vmem>>, vector<8x128xf32>
    tpu.vector_store %arg9[%c0_34, %c0_35], %100 {strides = array<i32>} : memref<8x128xf32, #tpu.memory_space<vmem>>, vector<8x128xf32>,
    return
  }
  func.func @transform_0(%arg0: i32) -> (i32, i32, i32) {
    %c0_i32 = arith.constant 0 : i32
    %c0_i32_0 = arith.constant 0 : i32
    %c0_i32_1 = arith.constant 0 : i32
    return %c0_i32, %arg0, %c0_i32_0 : i32, i32, i32
  }
  func.func @transform_1(%arg0: i32) -> (i32, i32) {
    %c0_i32 = arith.constant 0 : i32
    %c0_i32_0 = arith.constant 0 : i32
    %c0_i32_1 = arith.constant 0 : i32
    return %c0_i32, %c0_i32_0 : i32, i32
  }
  func.func @transform_2(%arg0: i32) -> (i32, i32) {
    %c0_i32 = arith.constant 0 : i32
    %c0_i32_0 = arith.constant 0 : i32
    %c0_i32_1 = arith.constant 0 : i32
    return %c0_i32, %c0_i32_0 : i32, i32
  }
  func.func @transform_3(%arg0: i32) -> (i32, i32) {
    %c0_i32 = arith.constant 0 : i32
    %c0_i32_0 = arith.constant 0 : i32
    %c0_i32_1 = arith.constant 0 : i32
    return %c0_i32, %c0_i32_0 : i32, i32
  }
  func.func @transform_4(%arg0: i32) -> (i32, i32) {
    %c0_i32 = arith.constant 0 : i32
    %c0_i32_0 = arith.constant 0 : i32
    %c0_i32_1 = arith.constant 0 : i32
    return %c0_i32, %c0_i32_0 : i32, i32
  }
  func.func @transform_5(%arg0: i32) -> (i32, i32) {
    %c0_i32 = arith.constant 0 : i32
    %c0_i32_0 = arith.constant 0 : i32
    %c0_i32_1 = arith.constant 0 : i32
    return %c0_i32, %c0_i32_0 : i32, i32
  }
  func.func @transform_6(%arg0: i32) -> (i32, i32) {
    %c0_i32 = arith.constant 0 : i32
    %c0_i32_0 = arith.constant 0 : i32
    %c0_i32_1 = arith.constant 0 : i32
    return %c0_i32, %c0_i32_0 : i32, i32
  }
  func.func @transform_7(%arg0: i32) -> (i32, i32) {
    %c0_i32 = arith.constant 0 : i32
    %c0_i32_0 = arith.constant 0 : i32
    %c0_i32_1 = arith.constant 0 : i32
    return %c0_i32, %c0_i32_0 : i32, i32
  }
  func.func @transform_8(%arg0: i32) -> (i32, i32) {
    %c0_i32 = arith.constant 0 : i32
    %c0_i32_0 = arith.constant 0 : i32
    return %arg0, %c0_i32 : i32, i32
  }
}

</mosaic_0001>

<llo_original>
// kernel: ss_network_forward_f_ll.1
$region0: #{ss_network_forward_f_ll.1}
  #allocation0 [shape = 'u32[]', space=smem, size = 0x4, offset = 0x4, fixed_abs, tag = 'smem constant byte address 0x4 - core index']
  #allocation1 [shape = 'u32[72,128]{1,0:T(1,128)}', space=vmem, size = 0x9000, scoped, tag = 'internal scratch']
  %s0 = inlined_call_operand.vmem [shape: s32[3,8,4], index: 0, kind: input, shape index: {}]
  %s1 = inlined_call_operand.vmem [shape: bf16[256,64], index: 1, kind: input, shape index: {}]
  %s2 = inlined_call_operand.vmem [shape: bf16[64,64], index: 2, kind: input, shape index: {}]
  %s3 = inlined_call_operand.vmem [shape: bf16[64,32], index: 3, kind: input, shape index: {}]
  %s4 = inlined_call_operand.vmem [shape: bf16[32,128], index: 4, kind: input, shape index: {}]
  %s5 = inlined_call_operand.vmem [shape: f32[1,64], index: 5, kind: input, shape index: {}]
  %s6 = inlined_call_operand.vmem [shape: f32[1,32], index: 6, kind: input, shape index: {}]
  %s7 = inlined_call_operand.vmem [shape: f32[1,128], index: 7, kind: input, shape index: {}]
  %s8 = inlined_call_operand.vmem [shape: f32[8,128], index: 8, kind: output, shape index: {}]
  %s9 = sld [smem:[#allocation0]]
  $region42: #{ss_network_forward_f_ll.1} parent=0
    _
  %s11 = ssub.s32 1, %s9
  %s12 = scalar_select 0, %s11, %s9
  // Predicated region
  $region2: #{ss_network_forward_f_ll.1} parent=0 // pred_check
    _
  $region3: #{ss_network_forward_f_ll.1} parent=0 // pred_check_branch
    %14 = sbr.rel (0) target = $region5
  $region4: #{ss_network_forward_f_ll.1} parent=0 // pred_region
    _
  $region5: #{ss_network_forward_f_ll.1} parent=0 // pred_fallthru
    _
  // Predicated region
  $region6: #{ss_network_forward_f_ll.1} parent=0 // pred_check
    _
  $region7: #{ss_network_forward_f_ll.1} parent=0 // pred_check_branch
    %16 = sbr.rel (0) target = $region9
  $region8: #{ss_network_forward_f_ll.1} parent=0 // pred_region
    _
  $region9: #{ss_network_forward_f_ll.1} parent=0 // pred_fallthru
    _
  // Predicated region
  $region10: #{ss_network_forward_f_ll.1} parent=0 // pred_check
    _
  $region11: #{ss_network_forward_f_ll.1} parent=0 // pred_check_branch
    %18 = sbr.rel (0) target = $region13
  $region12: #{ss_network_forward_f_ll.1} parent=0 // pred_region
    _
  $region13: #{ss_network_forward_f_ll.1} parent=0 // pred_fallthru
    _
  // Predicated region
  $region14: #{ss_network_forward_f_ll.1} parent=0 // pred_check
    _
  $region15: #{ss_network_forward_f_ll.1} parent=0 // pred_check_branch
    %20 = sbr.rel (0) target = $region17
  $region16: #{ss_network_forward_f_ll.1} parent=0 // pred_region
    _
  $region17: #{ss_network_forward_f_ll.1} parent=0 // pred_fallthru
    _
  // Predicated region
  $region18: #{ss_network_forward_f_ll.1} parent=0 // pred_check
    _
  $region19: #{ss_network_forward_f_ll.1} parent=0 // pred_check_branch
    %22 = sbr.rel (0) target = $region21
  $region20: #{ss_network_forward_f_ll.1} parent=0 // pred_region
    _
  $region21: #{ss_network_forward_f_ll.1} parent=0 // pred_fallthru
    _
  // Predicated region
  $region22: #{ss_network_forward_f_ll.1} parent=0 // pred_check
    _
  $region23: #{ss_network_forward_f_ll.1} parent=0 // pred_check_branch
    %24 = sbr.rel (0) target = $region25
  $region24: #{ss_network_forward_f_ll.1} parent=0 // pred_region
    _
  $region25: #{ss_network_forward_f_ll.1} parent=0 // pred_fallthru
    _
  // Predicated region
  $region26: #{ss_network_forward_f_ll.1} parent=0 // pred_check
    _
  $region27: #{ss_network_forward_f_ll.1} parent=0 // pred_check_branch
    %26 = sbr.rel (0) target = $region29
  $region28: #{ss_network_forward_f_ll.1} parent=0 // pred_region
    _
  $region29: #{ss_network_forward_f_ll.1} parent=0 // pred_fallthru
    _
  // Predicated region
  $region30: #{ss_network_forward_f_ll.1} parent=0 // pred_check
    _
  $region31: #{ss_network_forward_f_ll.1} parent=0 // pred_check_branch
    %28 = sbr.rel (0) target = $region33
  $region32: #{ss_network_forward_f_ll.1} parent=0 // pred_region
    _
  $region33: #{ss_network_forward_f_ll.1} parent=0 // pred_fallthru
    _
  %v30 = vld [vmem:[%s0] sm:$0xff]
  %v31 = vld [vmem:[%s0 + $0x8] sm:$0xff]
  %v32 = vld [vmem:[%s0 + $0x10] sm:$0xff]
  %v33 = vlaneseq
  %v34 = vand.u32 %v33, 127
  %v35 = vadd.s32 %v34, 128
  %36 = vset.pattern.permute.xlu0 0
  %37 = vperm.xlu0 %36, %v30
  %v38 = vpop.permute.xlu0 %37
  %39 = vset.pattern.permute.xlu0 0
  %40 = vperm.xlu0 %39, %v31
  %v41 = vpop.permute.xlu0 %40
  %42 = vset.pattern.permute.xlu0 0
  %43 = vperm.xlu0 %42, %v32
  %v44 = vpop.permute.xlu0 %43
  %vm45 = vcmp.eq.s32.totalorder %v34, %v38
  %vm46 = vcmp.eq.s32.totalorder %v35, %v38
  %vm47 = vcmp.eq.s32.totalorder %v34, %v41
  %vm48 = vcmp.eq.s32.totalorder %v35, %v41
  %vm49 = vcmp.eq.s32.totalorder %v34, %v44
  %vm50 = vcmp.eq.s32.totalorder %v35, %v44
  %51 = vset.pattern.permute.xlu0 1
  %52 = vperm.xlu0 %51, %v30
  %v53 = vpop.permute.xlu0 %52
  %54 = vset.pattern.permute.xlu0 1
  %55 = vperm.xlu0 %54, %v31
  %v56 = vpop.permute.xlu0 %55
  %57 = vset.pattern.permute.xlu0 1
  %58 = vperm.xlu0 %57, %v32
  %v59 = vpop.permute.xlu0 %58
  %vm60 = vcmp.eq.s32.totalorder %v34, %v53
  %vm61 = vcmp.eq.s32.totalorder %v35, %v53
  %vm62 = vcmp.eq.s32.totalorder %v34, %v56
  %vm63 = vcmp.eq.s32.totalorder %v35, %v56
  %vm64 = vcmp.eq.s32.totalorder %v34, %v59
  %vm65 = vcmp.eq.s32.totalorder %v35, %v59
  %vm66 = vmor %vm45, %vm60
  %vm67 = vmor %vm46, %vm61
  %vm68 = vmor %vm47, %vm62
  %vm69 = vmor %vm48, %vm63
  %vm70 = vmor %vm49, %vm64
  %vm71 = vmor %vm50, %vm65
  %72 = vset.pattern.permute.xlu0 2
  %73 = vperm.xlu0 %72, %v30
  %v74 = vpop.permute.xlu0 %73
  %75 = vset.pattern.permute.xlu0 2
  %76 = vperm.xlu0 %75, %v31
  %v77 = vpop.permute.xlu0 %76
  %78 = vset.pattern.permute.xlu0 2
  %79 = vperm.xlu0 %78, %v32
  %v80 = vpop.permute.xlu0 %79
  %vm81 = vcmp.eq.s32.totalorder %v34, %v74
  %vm82 = vcmp.eq.s32.totalorder %v35, %v74
  %vm83 = vcmp.eq.s32.totalorder %v34, %v77
  %vm84 = vcmp.eq.s32.totalorder %v35, %v77
  %vm85 = vcmp.eq.s32.totalorder %v34, %v80
  %vm86 = vcmp.eq.s32.totalorder %v35, %v80
  %vm87 = vmor %vm66, %vm81
  %vm88 = vmor %vm67, %vm82
  %vm89 = vmor %vm68, %vm83
  %vm90 = vmor %vm69, %vm84
  %vm91 = vmor %vm70, %vm85
  %vm92 = vmor %vm71, %vm86
  %93 = vset.pattern.permute.xlu0 3
  %94 = vperm.xlu0 %93, %v30
  %v95 = vpop.permute.xlu0 %94
  %96 = vset.pattern.permute.xlu0 3
  %97 = vperm.xlu0 %96, %v31
  %v98 = vpop.permute.xlu0 %97
  %99 = vset.pattern.permute.xlu0 3
  %100 = vperm.xlu0 %99, %v32
  %v101 = vpop.permute.xlu0 %100
  %vm102 = vcmp.eq.s32.totalorder %v34, %v95
  %vm103 = vcmp.eq.s32.totalorder %v35, %v95
  %vm104 = vcmp.eq.s32.totalorder %v34, %v98
  %vm105 = vcmp.eq.s32.totalorder %v35, %v98
  %vm106 = vcmp.eq.s32.totalorder %v34, %v101
  %vm107 = vcmp.eq.s32.totalorder %v35, %v101
  %vm108 = vmor %vm87, %vm102
  %vm109 = vmor %vm88, %vm103
  %vm110 = vmor %vm89, %vm104
  %vm111 = vmor %vm90, %vm105
  %vm112 = vmor %vm91, %vm106
  %vm113 = vmor %vm92, %vm107
  %v114 = vsel %vm108, 1, 0
  %v115 = vsel %vm109, 1, 0
  %v116 = vsel %vm110, 1, 0
  %v117 = vsel %vm111, 1, 0
  %v118 = vsel %vm112, 1, 0
  %v119 = vsel %vm113, 1, 0
  %v120 = vcvt.s32.f32 %v114
  %v121 = vcvt.s32.f32 %v115
  %v122 = vcvt.s32.f32 %v116
  %v123 = vcvt.s32.f32 %v117
  %v124 = vcvt.s32.f32 %v118
  %v125 = vcvt.s32.f32 %v119
  %v126 = vpack.c.bf16 %v122, %v120
  %v127 = vpack.c.bf16 %v123, %v121
  %v128 = vpack.c.bf16 %v124, %v124
  %v129 = vpack.c.bf16 %v125, %v125
  %v130 = vld [vmem:[%s1] sm:$0xf]
  %v131 = vld [vmem:[%s1 + $0x4] sm:$0xf]
  %v132 = vld [vmem:[%s1 + $0x8] sm:$0xf]
  %v133 = vld [vmem:[%s1 + $0xc] sm:$0xf]
  %v134 = vld [vmem:[%s1 + $0x10] sm:$0xf]
  %v135 = vld [vmem:[%s1 + $0x14] sm:$0xf]
  %v136 = vld [vmem:[%s1 + $0x18] sm:$0xf]
  %v137 = vld [vmem:[%s1 + $0x1c] sm:$0xf]
  %v138 = vld [vmem:[%s1 + $0x20] sm:$0xf]
  %v139 = vld [vmem:[%s1 + $0x24] sm:$0xf]
  %v140 = vld [vmem:[%s1 + $0x28] sm:$0xf]
  %v141 = vld [vmem:[%s1 + $0x2c] sm:$0xf]
  %v142 = vld [vmem:[%s1 + $0x30] sm:$0xf]
  %v143 = vld [vmem:[%s1 + $0x34] sm:$0xf]
  %v144 = vld [vmem:[%s1 + $0x38] sm:$0xf]
  %v145 = vld [vmem:[%s1 + $0x3c] sm:$0xf]
  %v146 = vld [vmem:[%s1 + $0x40] sm:$0xf]
  %v147 = vld [vmem:[%s1 + $0x44] sm:$0xf]
  %v148 = vld [vmem:[%s1 + $0x48] sm:$0xf]
  %v149 = vld [vmem:[%s1 + $0x4c] sm:$0xf]
  %v150 = vld [vmem:[%s1 + $0x50] sm:$0xf]
  %v151 = vld [vmem:[%s1 + $0x54] sm:$0xf]
  %v152 = vld [vmem:[%s1 + $0x58] sm:$0xf]
  %v153 = vld [vmem:[%s1 + $0x5c] sm:$0xf]
  %v154 = vld [vmem:[%s1 + $0x60] sm:$0xf]
  %v155 = vld [vmem:[%s1 + $0x64] sm:$0xf]
  %v156 = vld [vmem:[%s1 + $0x68] sm:$0xf]
  %v157 = vld [vmem:[%s1 + $0x6c] sm:$0xf]
  %v158 = vld [vmem:[%s1 + $0x70] sm:$0xf]
  %v159 = vld [vmem:[%s1 + $0x74] sm:$0xf]
  %v160 = vld [vmem:[%s1 + $0x78] sm:$0xf]
  %v161 = vld [vmem:[%s1 + $0x7c] sm:$0xf]
  %v194 = vunpack.c.l.b16 %v130
  %v195 = vunpack.c.l.b16 %v131
  %v196 = vunpack.c.l.b16 %v132
  %v197 = vunpack.c.l.b16 %v133
  %v198 = vunpack.c.l.b16 %v134
  %v199 = vunpack.c.l.b16 %v135
  %v200 = vunpack.c.l.b16 %v136
  %v201 = vunpack.c.l.b16 %v137
  %v202 = vunpack.c.l.b16 %v138
  %v203 = vunpack.c.l.b16 %v139
  %v204 = vunpack.c.l.b16 %v140
  %v205 = vunpack.c.l.b16 %v141
  %v206 = vunpack.c.l.b16 %v142
  %v207 = vunpack.c.l.b16 %v143
  %v208 = vunpack.c.l.b16 %v144
  %v209 = vunpack.c.l.b16 %v145
  %v210 = vunpack.c.l.b16 %v146
  %v211 = vunpack.c.l.b16 %v147
  %v212 = vunpack.c.l.b16 %v148
  %v213 = vunpack.c.l.b16 %v149
  %v214 = vunpack.c.l.b16 %v150
  %v215 = vunpack.c.l.b16 %v151
  %v216 = vunpack.c.l.b16 %v152
  %v217 = vunpack.c.l.b16 %v153
  %v218 = vunpack.c.l.b16 %v154
  %v219 = vunpack.c.l.b16 %v155
  %v220 = vunpack.c.l.b16 %v156
  %v221 = vunpack.c.l.b16 %v157
  %v222 = vunpack.c.l.b16 %v158
  %v223 = vunpack.c.l.b16 %v159
  %v224 = vunpack.c.l.b16 %v160
  %v225 = vunpack.c.l.b16 %v161
  %v226 = vpack.c.b16 %v195, %v194
  %v227 = vpack.c.b16 %v197, %v196
  %v228 = vpack.c.b16 %v199, %v198
  %v229 = vpack.c.b16 %v201, %v200
  %v230 = vpack.c.b16 %v203, %v202
  %v231 = vpack.c.b16 %v205, %v204
  %v232 = vpack.c.b16 %v207, %v206
  %v233 = vpack.c.b16 %v209, %v208
  %v234 = vpack.c.b16 %v211, %v210
  %v235 = vpack.c.b16 %v213, %v212
  %v236 = vpack.c.b16 %v215, %v214
  %v237 = vpack.c.b16 %v217, %v216
  %v238 = vpack.c.b16 %v219, %v218
  %v239 = vpack.c.b16 %v221, %v220
  %v240 = vpack.c.b16 %v223, %v222
  %v241 = vpack.c.b16 %v225, %v224
  %258 = vmatpush.bf16.msra.mxu0 %v233
  %259 = vmatpush.bf16.msra.mxu0 %v232
  %260 = vmatpush.bf16.msra.mxu0 %v231
  %261 = vmatpush.bf16.msra.mxu0 %v230
  %262 = vmatpush.bf16.msra.mxu0 %v229
  %263 = vmatpush.bf16.msra.mxu0 %v228
  %264 = vmatpush.bf16.msra.mxu0 %v227
  %265 = vmatpush.bf16.msra.mxu0 %v226
  %266 = vmatmul.bf16.gmra.mxu0 %v126
  %v267 = vpop.f32.mrf.mxu0
  %v268 = vadd.f32 0.0, %v267
  %v269 = vpop.f32.mrf.mxu0
  %v270 = vadd.f32 0.0, %v269
  %271 = vmatmul.bf16.gmra.mxu0 %v128
  %v272 = vpop.f32.mrf.mxu0
  %v273 = vadd.f32 0.0, %v272
  %v274 = vpop.f32.mrf.mxu0
  %275 = vdwg.mxu0
  %276 = vmatpush.bf16.msra.mxu0 %v241
  %277 = vmatpush.bf16.msra.mxu0 %v240
  %278 = vmatpush.bf16.msra.mxu0 %v239
  %279 = vmatpush.bf16.msra.mxu0 %v238
  %280 = vmatpush.bf16.msra.mxu0 %v237
  %281 = vmatpush.bf16.msra.mxu0 %v236
  %282 = vmatpush.bf16.msra.mxu0 %v235
  %283 = vmatpush.bf16.msra.mxu0 %v234
  %284 = vmatmul.bf16.gmra.mxu0 %v127
  %v285 = vpop.f32.mrf.mxu0
  %v286 = vadd.f32 %v268, %v285
  %v287 = vpop.f32.mrf.mxu0
  %v288 = vadd.f32 %v270, %v287
  %289 = vmatmul.bf16.gmra.mxu0 %v129
  %v290 = vpop.f32.mrf.mxu0
  %v291 = vadd.f32 %v273, %v290
  %v292 = vpop.f32.mrf.mxu0
  %293 = vdwg.mxu0
  %v294 = vsub.f32 %v286, %v288
  %v295 = vand.u32 2147483647, %v294
  %v296 = vpack.c.bf16 %v291, %v295
  %v297 = vld [vmem:[%s2] sm:$0xf]
  %v298 = vld [vmem:[%s2 + $0x4] sm:$0xf]
  %v299 = vld [vmem:[%s2 + $0x8] sm:$0xf]
  %v300 = vld [vmem:[%s2 + $0xc] sm:$0xf]
  %v301 = vld [vmem:[%s2 + $0x10] sm:$0xf]
  %v302 = vld [vmem:[%s2 + $0x14] sm:$0xf]
  %v303 = vld [vmem:[%s2 + $0x18] sm:$0xf]
  %v304 = vld [vmem:[%s2 + $0x1c] sm:$0xf]
  %v305 = vld [vmem:[%s5] sm:$0x1]
  %v307 = vperm.slane %v305, 0
  %v317 = vunpack.c.l.b16 %v297
  %v318 = vunpack.c.l.b16 %v298
  %v319 = vunpack.c.l.b16 %v299
  %v320 = vunpack.c.l.b16 %v300
  %v321 = vunpack.c.l.b16 %v301
  %v322 = vunpack.c.l.b16 %v302
  %v323 = vunpack.c.l.b16 %v303
  %v324 = vunpack.c.l.b16 %v304
  %v325 = vpack.c.b16 %v318, %v317
  %v326 = vpack.c.b16 %v320, %v319
  %v327 = vpack.c.b16 %v322, %v321
  %v328 = vpack.c.b16 %v324, %v323
  %vm333 = vcmask 523264
  %v335 = vsel %vm333, %v296, 0
  %337 = vmatpush.bf16.msra.mxu0 0
  %338 = vmatpush.bf16.msra.mxu0 0
  %339 = vmatpush.bf16.msra.mxu0 0
  %340 = vmatpush.bf16.msra.mxu0 0
  %341 = vmatpush.bf16.msra.mxu0 %v328
  %342 = vmatpush.bf16.msra.mxu0 %v327
  %343 = vmatpush.bf16.msra.mxu0 %v326
  %344 = vmatpush.bf16.msra.mxu0 %v325
  %345 = vmatmul.bf16.gmra.mxu0 %v335
  %v346 = vpop.f32.mrf.mxu0
  %v347 = vadd.f32 %v307, %v346
  %v348 = vpop.f32.mrf.mxu0
  %v349 = vadd.f32 %v307, %v348
  %350 = vdwg.mxu0
  %vm351 = vcmp.gt.f32.partialorder %v347, 0.0
  %vm352 = vcmp.gt.f32.partialorder %v349, 0.0
  %v353 = vmul.f32 %v347, 1.442695
  %v354 = vpow.pop %v353
  %v355 = vmul.f32 %v349, 1.442695
  %v356 = vpow.pop %v355
  %v357 = vsub.f32 %v354, 1.0
  %v358 = vsub.f32 %v356, 1.0
  %v359 = vmul.f32 %v357, 1.6732632
  %v360 = vmul.f32 %v358, 1.6732632
  %v361 = vsel %vm351, %v347, %v359
  %v362 = vsel %vm352, %v349, %v360
  %v363 = vmul.f32 %v361, 1.050701
  %v364 = vmul.f32 %v362, 1.050701
  %v365 = vpack.c.bf16 %v364, %v363
  %v366 = vld [vmem:[%s3] sm:$0xf]
  %v367 = vld [vmem:[%s3 + $0x4] sm:$0xf]
  %v368 = vld [vmem:[%s3 + $0x8] sm:$0xf]
  %v369 = vld [vmem:[%s3 + $0xc] sm:$0xf]
  %v370 = vld [vmem:[%s3 + $0x10] sm:$0xf]
  %v371 = vld [vmem:[%s3 + $0x14] sm:$0xf]
  %v372 = vld [vmem:[%s3 + $0x18] sm:$0xf]
  %v373 = vld [vmem:[%s3 + $0x1c] sm:$0xf]
  %v374 = vld [vmem:[%s6] sm:$0x1]
  %v376 = vperm.slane %v374, 0
  %v386 = vunpack.c.l.b16 %v366
  %v387 = vunpack.c.l.b16 %v367
  %v388 = vunpack.c.l.b16 %v368
  %v389 = vunpack.c.l.b16 %v369
  %v390 = vunpack.c.l.b16 %v370
  %v391 = vunpack.c.l.b16 %v371
  %v392 = vunpack.c.l.b16 %v372
  %v393 = vunpack.c.l.b16 %v373
  %v394 = vpack.c.b16 %v387, %v386
  %v395 = vpack.c.b16 %v389, %v388
  %v396 = vpack.c.b16 %v391, %v390
  %v397 = vpack.c.b16 %v393, %v392
  %v403 = vsel %vm333, %v365, 0
  %405 = vmatpush.bf16.msra.mxu0 0
  %406 = vmatpush.bf16.msra.mxu0 0
  %407 = vmatpush.bf16.msra.mxu0 0
  %408 = vmatpush.bf16.msra.mxu0 0
  %409 = vmatpush.bf16.msra.mxu0 %v397
  %410 = vmatpush.bf16.msra.mxu0 %v396
  %411 = vmatpush.bf16.msra.mxu0 %v395
  %412 = vmatpush.bf16.msra.mxu0 %v394
  %413 = vmatmul.bf16.gmra.mxu0 %v403
  %v414 = vpop.f32.mrf.mxu0
  %v415 = vadd.f32 %v376, %v414
  %v416 = vpop.f32.mrf.mxu0
  %v417 = vadd.f32 %v376, %v416
  %418 = vdwg.mxu0
  %vm419 = vcmp.gt.f32.partialorder %v415, 0.0
  %vm420 = vcmp.gt.f32.partialorder %v417, 0.0
  %v421 = vmul.f32 %v415, 1.442695
  %v422 = vpow.pop %v421
  %v423 = vmul.f32 %v417, 1.442695
  %v424 = vpow.pop %v423
  %v425 = vsub.f32 %v422, 1.0
  %v426 = vsub.f32 %v424, 1.0
  %v427 = vmul.f32 %v425, 1.6732632
  %v428 = vmul.f32 %v426, 1.6732632
  %v429 = vsel %vm419, %v415, %v427
  %v430 = vsel %vm420, %v417, %v428
  %v431 = vmul.f32 %v429, 1.050701
  %v432 = vmul.f32 %v430, 1.050701
  %v433 = vpack.c.bf16 %v432, %v431
  %v434 = vld [vmem:[%s4] sm:$0xf]
  %v435 = vld [vmem:[%s4 + $0x4] sm:$0xf]
  %v436 = vld [vmem:[%s4 + $0x8] sm:$0xf]
  %v437 = vld [vmem:[%s4 + $0xc] sm:$0xf]
  %v438 = vld [vmem:[%s7] sm:$0x1]
  %v440 = vperm.slane %v438, 0
  %v446 = vunpack.c.l.b16 %v434
  %v447 = vunpack.c.l.b16 %v435
  %v448 = vunpack.c.l.b16 %v436
  %v449 = vunpack.c.l.b16 %v437
  %v450 = vpack.c.b16 %v447, %v446
  %v451 = vpack.c.b16 %v449, %v448
  %vm454 = vcmask 261120
  %v456 = vsel %vm454, %v433, 0
  %458 = vmatpush.bf16.msra.mxu0 0
  %459 = vmatpush.bf16.msra.mxu0 0
  %460 = vmatpush.bf16.msra.mxu0 0
  %461 = vmatpush.bf16.msra.mxu0 0
  %462 = vmatpush.bf16.msra.mxu0 0
  %463 = vmatpush.bf16.msra.mxu0 0
  %464 = vmatpush.bf16.msra.mxu0 %v451
  %465 = vmatpush.bf16.msra.mxu0 %v450
  %466 = vmatmul.bf16.gmra.mxu0 %v456
  %v467 = vpop.f32.mrf.mxu0
  %v468 = vadd.f32 %v440, %v467
  %v469 = vpop.f32.mrf.mxu0
  %v470 = vadd.f32 %v440, %v469
  %471 = vdwg.mxu0
  %v472 = vmax.f32 %v468, -60.0
  %vm473 = vcmp.eq.s32.totalorder %v34, 0
  %v474 = vsel %vm473, -1e+30, %v470
  %v475 = vsub.f32 0.0, %v472
  %v476 = vmul.f32 %v475, 1.442695
  %v477 = vpow.pop %v476
  %v478 = vadd.f32 %v477, 1.0
  %v479 = vrcp.pop %v478
  %480 = vmax.xlane.f32.xlu0 %v474
  %v481 = vpop.xlane.xlu0 %480
  %v482 = vsub.f32 %v474, %v481
  %v483 = vmul.f32 %v482, 1.442695
  %v484 = vpow.pop %v483
  %485 = vadd.xlane.f32.xlu0 %v484
  %v486 = vpop.xlane.xlu0 %485
  %v487 = vrcp.pop %v486
  %v488 = vmul.f32 %v484, %v487
  %v489 = vsel %vm473, %v479, %v488
  %490 = vst [vmem:[%s8] sm:$0xff] %v489
  // Predicated region
  $region34: #{ss_network_forward_f_ll.1} parent=0 // pred_check
    _
  $region35: #{ss_network_forward_f_ll.1} parent=0 // pred_check_branch
    %492 = sbr.rel (0) target = $region37
  $region36: #{ss_network_forward_f_ll.1} parent=0 // pred_region
    _
  $region37: #{ss_network_forward_f_ll.1} parent=0 // pred_fallthru
    _
  // Predicated region
  $region38: #{ss_network_forward_f_ll.1} parent=0 // pred_check
    _
  $region39: #{ss_network_forward_f_ll.1} parent=0 // pred_check_branch
    %494 = sbr.rel (0) target = $region41
  $region40: #{ss_network_forward_f_ll.1} parent=0 // pred_region
    _
  $region41: #{ss_network_forward_f_ll.1} parent=0 // pred_fallthru
    _

</llo_original>
